<compile_context>
chip_gen: v5e
topology: v5e:2x2
jax: 0.10.0
libtpu: 0.0.40
codegen_flags: <defaults>
</compile_context>

<pallas_src>
import jax
import jax.numpy as jnp
from jax.experimental import pallas as pl
from jax.experimental.pallas import tpu as pltpu


def _mask_kernel(x_ref, m_ref, o_ref):
    # x_ref: (1, C_blk, hw_blk); m_ref: (1, 1, hw_blk) -> broadcasts over channels.
    x = x_ref[...]
    m = m_ref[...].astype(x.dtype)          # in-kernel cast: free on the VPU
    o_ref[...] = jnp.maximum(x * m, jnp.zeros((), dtype=x.dtype))


def _pick_block(dim, target, quantum):
    """Choose a block size for one axis.

    Preference order:
      1. full extent if the whole axis fits under `target` (always layout-legal),
      2. the largest multiple of `quantum` <= target that divides `dim` evenly
         (no ragged last block),
      3. `target` rounded down to `quantum` (ragged last block, masked by Pallas).
    """
    if dim <= target:
        return dim
    best_div = 0
    b = quantum
    while b <= target:
        if dim % b == 0:
            best_div = b
        b += quantum
    if best_div:
        return best_div
    return max(quantum, (target // quantum) * quantum)


def mask_layer(x, mask, *, hw_target=4096, c_target=64):
    """x: (N, C, H, W); mask: (N, H, W). Returns clamp(x * mask[:, None], min=0)."""
    N, C, H, W = x.shape
    assert mask.shape == (N, H, W)

    HW = H * W
    x2 = x.reshape(N, C, HW)            # contiguous row-major -> free reshape
    m2 = mask.reshape(N, 1, HW)

    # Sublane quantum scales with packing (f32: 8, bf16: 16, int8: 32).
    c_quantum = 8 * max(1, 4 // jnp.dtype(x.dtype).itemsize)

    hw_blk = _pick_block(HW, hw_target, 128)       # lane-dense last dim
    c_blk = _pick_block(C, c_target, c_quantum)    # sublane dim

    # Channel axis innermost so the mask block index is constant across it
    # (redundant mask DMAs are skipped); N / hw axes are "parallel" so the
    # grid can shard across TensorCores on megacore parts.
    grid = (N, pl.cdiv(HW, hw_blk), pl.cdiv(C, c_blk))

    out = pl.pallas_call(
        _mask_kernel,
        out_shape=jax.ShapeDtypeStruct((N, C, HW), x.dtype),
        grid_spec=pltpu.PrefetchScalarGridSpec(
            num_scalar_prefetch=0,
            grid=grid,
            in_specs=[
                pl.BlockSpec((1, c_blk, hw_blk), lambda n, hw, c: (n, c, hw)),
                pl.BlockSpec((1, 1, hw_blk), lambda n, hw, c: (n, 0, hw)),
            ],
            out_specs=pl.BlockSpec((1, c_blk, hw_blk), lambda n, hw, c: (n, c, hw)),
        ),
        compiler_params=pltpu.CompilerParams(
            dimension_semantics=("parallel", "parallel", "arbitrary"),
            # Worst-case resident tiles at the default targets:
            #   x (2x) + out (2x) ~= 4 * 64*4096*4B = 4 MiB, mask ~= 32 KiB.
            # 32 MiB is safe on every generation (v7x scoped default is 32 MiB
            # of 64 MiB physical) while leaving room for larger target sweeps.
            vmem_limit_bytes=32 * 1024 * 1024,
        ),
    )(x2, m2)
    return out.reshape(N, C, H, W)


if __name__ == "__main__":
    key = jax.random.PRNGKey(0)
    kx, km = jax.random.split(key)

    N, C, H, W = 2, 4, 16, 16
    x = jax.random.normal(kx, (N, C, H, W), dtype=jnp.float32)
    # Mask values in [-1, 1] so the clamp actually does something.
    mask = jax.random.uniform(km, (N, H, W), dtype=jnp.float32, minval=-1.0, maxval=1.0)

    out = mask_layer(x, mask)
    out = jax.block_until_ready(out)

    # Reference check in plain JAX (mirrors the PyTorch forward exactly).
    ref = jnp.maximum(x * mask[:, None, :, :], 0.0)
    assert out.shape == (N, C, H, W)
    assert jnp.allclose(out, ref, atol=1e-6), "mismatch vs reference"

    print("KERNEL_OK")
</pallas_src>

<mosaic_0001>
module attributes {stable_mosaic.version = 11 : i64} {
  func.func @_mask_kernel(%arg0: i32, %arg1: i32, %arg2: i32, %arg3: memref<1x4x256xf32, #tpu.memory_space<vmem>>, %arg4: memref<1x1x256xf32, #tpu.memory_space<vmem>>, %arg5: memref<1x4x256xf32, #tpu.memory_space<vmem>>) attributes {dimension_semantics = [#tpu.dimension_semantics<parallel>, #tpu.dimension_semantics<parallel>, #tpu.dimension_semantics<arbitrary>], iteration_bounds = array<i64: 2, 1, 1>, scalar_prefetch = 0 : i64, scratch_operands = 0 : i64, tpu.core_type = #tpu.core_type<tc>, window_params = [{transform_indices = @transform_0, window_bounds = array<i64: 1, 4, 256>}, {transform_indices = @transform_1, window_bounds = array<i64: 1, 1, 256>}, {transform_indices = @transform_2, window_bounds = array<i64: 1, 4, 256>}]} {
    %c0 = arith.constant 0 : index
    %c0_0 = arith.constant 0 : index
    %c0_1 = arith.constant 0 : index
    %0 = vector.load %arg3[%c0, %c0_0, %c0_1] : memref<1x4x256xf32, #tpu.memory_space<vmem>>, vector<1x4x256xf32>
    %c0_2 = arith.constant 0 : index
    %c0_3 = arith.constant 0 : index
    %c0_4 = arith.constant 0 : index
    %1 = vector.load %arg4[%c0_2, %c0_3, %c0_4] : memref<1x1x256xf32, #tpu.memory_space<vmem>>, vector<1x1x256xf32>
    %2 = vector.broadcast %1 : vector<1x1x256xf32> to vector<1x4x256xf32>
    %3 = arith.mulf %0, %2 : vector<1x4x256xf32>
    %cst = arith.constant 0.000000e+00 : f32
    %4 = vector.broadcast %cst : f32 to vector<1x4x256xf32>
    %5 = arith.maximumf %3, %4 : vector<1x4x256xf32>
    %c0_5 = arith.constant 0 : index
    %c0_6 = arith.constant 0 : index
    %c0_7 = arith.constant 0 : index
    %6 = vector.load %arg5[%c0_5, %c0_6, %c0_7] : memref<1x4x256xf32, #tpu.memory_space<vmem>>, vector<1x4x256xf32>
    tpu.vector_store %arg5[%c0_5, %c0_6, %c0_7], %5 {strides = array<i32>} : memref<1x4x256xf32, #tpu.memory_space<vmem>>, vector<1x4x256xf32>,
    return
  }
  func.func @transform_0(%arg0: i32, %arg1: i32, %arg2: i32) -> (i32, i32, i32) {
    %c0_i32 = arith.constant 0 : i32
    return %arg0, %arg2, %arg1 : i32, i32, i32
  }
  func.func @transform_1(%arg0: i32, %arg1: i32, %arg2: i32) -> (i32, i32, i32) {
    %c0_i32 = arith.constant 0 : i32
    %c0_i32_0 = arith.constant 0 : i32
    return %arg0, %c0_i32, %arg1 : i32, i32, i32
  }
  func.func @transform_2(%arg0: i32, %arg1: i32, %arg2: i32) -> (i32, i32, i32) {
    %c0_i32 = arith.constant 0 : i32
    return %arg0, %arg2, %arg1 : i32, i32, i32
  }
}

</mosaic_0001>

<llo_original>
// kernel: tpu_custom_call.1
$region0: #{tpu_custom_call.1}
  #allocation0 [shape = 'u32[]', space=smem, size = 0x4, offset = 0x4, fixed_abs, tag = 'smem constant byte address 0x4 - core index']
  #allocation1 [shape = 'u32[72,128]{1,0:T(1,128)}', space=vmem, size = 0x9000, scoped, tag = 'internal scratch']
  %s0 = inlined_call_operand.hbm [shape: f32[2,4,256], index: 0, kind: input, shape index: {}]
  %s1 = inlined_call_operand.hbm [shape: f32[2,1,256], index: 1, kind: input, shape index: {}]
  %s2 = inlined_call_operand.hbm [shape: f32[2,4,256], index: 2, kind: output, shape index: {}]
  %s3 = sld [smem:[#allocation0]]
  $region49: #{tpu_custom_call.1} parent=0
    _
  %s5 = ssub.s32 1, %s3
  %s6 = scalar_select 0, %s5, %s3
  $region1: #{tpu_custom_call.1} parent=0
    #allocation2 [shape = 'u8[8192]{0}', space=vmem, size = 0x2000, scoped, tag = 'input window, operand 0']
    #allocation3 [shape = 's32[2]{0}', space=sflag, size = 0x8, scoped, tag = 'scoped memory for tpu_custom_call.1']
    #allocation4 [shape = 's32[2]{0}', space=sflag, size = 0x8, scoped, tag = 'scoped memory for tpu_custom_call.1']
    #allocation5 [shape = 'u8[2048]{0}', space=vmem, size = 0x800, scoped, tag = 'input window, operand 1']
    #allocation6 [shape = 's32[2]{0}', space=sflag, size = 0x8, scoped, tag = 'scoped memory for tpu_custom_call.1']
    #allocation7 [shape = 'u8[8192]{0}', space=vmem, size = 0x2000, scoped, tag = 'output window, operand 0']
    %7 = vsyncpa [#allocation3], 0
    %s8 = scalar_lea.sflag [#allocation3], 1
    %9 = vsyncpa %s8, 0
    %10 = vsyncpa [#allocation6], 0
    %s11 = scalar_lea.sflag [#allocation6], 1
    %12 = vsyncpa %s11, 0
    %13 = vsyncpa [#allocation4], 0
    %s14 = scalar_lea.sflag [#allocation4], 1
    %15 = vsyncpa %s14, 0
    loop: start=0, step=1, limit=4
    $region2: #{tpu_custom_call.1} parent=1 // loop_pre_header
      _
    $region3: #{tpu_custom_call.1} parent=1 // loop_header
      %s17 = sphi 0, %s21
      %p18 = scmp.ge.s32.totalorder %s17, 4
      %s24 = sphi 0, %s43
      %s25 = sphi 0, %s39
      %s26 = sphi 0, %s35
      %s27 = sphi 0, %s24
      %s28 = sphi 0, %s25
      %s29 = sphi 0, %s26
      %s30 = sphi 0, %s27
      %s31 = sphi 0, %s28
      %s32 = sphi 0, %s29
      %s50 = sphi 0, %s52
      %s53 = sphi 0, %s50
      %s54 = sphi 0, %s53
      %s70 = sphi 0, %s54
      %s78 = sphi 0, %s80
      %s81 = sphi 0, %s78
      %s82 = sphi 0, %s81
      %s98 = sphi 0, %s82
      %s108 = sphi 0, %s110
      %s111 = sphi 0, %s108
      %s112 = sphi 0, %s111
      %s128 = sphi 0, %s112
    $region4: #{tpu_custom_call.1} parent=1 // loop_header_branch
      %20 = sbr.rel (%p18) target = $region8
    $region5: #{tpu_custom_call.1} parent=1 // loop_body
      %s22 = ssub.s32 %s17, 1
      %s23 = ssub.s32 %s17, 2
      %s33 = sadd.s32 1, %s26
      %p34 = scmp.ge.s32.totalorder %s33, 1
      %s35 = scalar_select %p34, 0, %s33
      %s36 = sadd.s32 1, %s25
      %s37 = scalar_select %p34, %s36, %s25
      %p38 = scmp.ge.s32.totalorder %s37, 1
      %s39 = scalar_select %p38, 0, %s37
      %s40 = sadd.s32 1, %s24
      %s41 = scalar_select %p38, %s40, %s24
      %p42 = scmp.ge.s32.totalorder %s41, 2
      %s43 = scalar_select %p42, 0, %s41
      %s44 = ssub.s32 %s24, %s43
      %s45 = ssub.s32 %s26, %s35
      %s46 = sor.u32 %s44, %s45
      %s47 = ssub.s32 %s25, %s39
      %s48 = sor.u32 %s46, %s47
      %p49 = scmp.eq.s32.totalorder %s48, 0
      %s51 = sadd.s32 %s50, 1
      %s52 = scalar_select %p49, %s50, %s51
      %p55 = pneg %p49
      %p56 = scmp.eq.s32.totalorder %s17, 1
      %p57 = por %p55, %p56
      %p58 = scmp.ne.s32.totalorder %s50, %s53
      %p59 = scmp.eq.s32.totalorder %s17, 0
      %p60 = por %p58, %p59
      %p61 = scmp.ne.s32.totalorder %s50, %s53
      %p62 = scmp.eq.s32.totalorder %s22, 1
      %p63 = por %p61, %p62
      %p64 = scmp.ne.s32.totalorder %s53, %s54
      %p65 = scmp.eq.s32.totalorder %s22, 0
      %p66 = por %p64, %p65
      %p67 = scmp.ne.s32.totalorder %s53, %s54
      %p68 = scmp.eq.s32.totalorder %s23, 1
      %p69 = por %p67, %p68
      %p71 = scmp.ne.s32.totalorder %s54, %s70
      %p72 = scmp.eq.s32.totalorder %s23, 0
      %p73 = por %p71, %p72
      %s74 = ssub.s32 %s24, %s43
      %s75 = ssub.s32 %s25, %s39
      %s76 = sor.u32 %s74, %s75
      %p77 = scmp.eq.s32.totalorder %s76, 0
      %s79 = sadd.s32 %s78, 1
      %s80 = scalar_select %p77, %s78, %s79
      %p83 = pneg %p77
      %p84 = scmp.eq.s32.totalorder %s17, 1
      %p85 = por %p83, %p84
      %p86 = scmp.ne.s32.totalorder %s78, %s81
      %p87 = scmp.eq.s32.totalorder %s17, 0
      %p88 = por %p86, %p87
      %p89 = scmp.ne.s32.totalorder %s78, %s81
      %p90 = scmp.eq.s32.totalorder %s22, 1
      %p91 = por %p89, %p90
      %p92 = scmp.ne.s32.totalorder %s81, %s82
      %p93 = scmp.eq.s32.totalorder %s22, 0
      %p94 = por %p92, %p93
      %p95 = scmp.ne.s32.totalorder %s81, %s82
      %p96 = scmp.eq.s32.totalorder %s23, 1
      %p97 = por %p95, %p96
      %p99 = scmp.ne.s32.totalorder %s82, %s98
      %p100 = scmp.eq.s32.totalorder %s23, 0
      %p101 = por %p99, %p100
      %s102 = ssub.s32 %s24, %s43
      %s103 = ssub.s32 %s26, %s35
      %s104 = sor.u32 %s102, %s103
      %s105 = ssub.s32 %s25, %s39
      %s106 = sor.u32 %s104, %s105
      %p107 = scmp.eq.s32.totalorder %s106, 0
      %s109 = sadd.s32 %s108, 1
      %s110 = scalar_select %p107, %s108, %s109
      %p113 = pneg %p107
      %p114 = scmp.eq.s32.totalorder %s17, 1
      %p115 = por %p113, %p114
      %p116 = scmp.ne.s32.totalorder %s108, %s111
      %p117 = scmp.eq.s32.totalorder %s17, 0
      %p118 = por %p116, %p117
      %p119 = scmp.ne.s32.totalorder %s108, %s111
      %p120 = scmp.eq.s32.totalorder %s22, 1
      %p121 = por %p119, %p120
      %p122 = scmp.ne.s32.totalorder %s111, %s112
      %p123 = scmp.eq.s32.totalorder %s22, 0
      %p124 = por %p122, %p123
      %p125 = scmp.ne.s32.totalorder %s111, %s112
      %p126 = scmp.eq.s32.totalorder %s23, 1
      %p127 = por %p125, %p126
      %p129 = scmp.ne.s32.totalorder %s112, %s128
      %p130 = scmp.eq.s32.totalorder %s23, 0
      %p131 = por %p129, %p130
      %p132 = scmp.le.s32.totalorder 1, %s17
      %p133 = scmp.lt.s32.totalorder %s17, 3
      %p134 = pnand %p132, %p133
      %p135 = pneg %p134
      // Predicated region
      $region9: #{tpu_custom_call.1} parent=5 // pred_check
        _
      $region10: #{tpu_custom_call.1} parent=5 // pred_check_branch
        %137 = sbr.rel (%p134) target = $region12
      $region11: #{tpu_custom_call.1} parent=5 // pred_region
        %s138 = ssub.s32 %s17, 1
      $region12: #{tpu_custom_call.1} parent=5 // pred_fallthru
        _
      %p139 = scmp.lt.s32.totalorder %s17, 2
      // Predicated region
      $region13: #{tpu_custom_call.1} parent=5 // pred_check
        %p140 = pneg %p139
      $region14: #{tpu_custom_call.1} parent=5 // pred_check_branch
        %142 = sbr.rel (%p140) target = $region16
      $region15: #{tpu_custom_call.1} parent=5 // pred_region
        // Predicated region
        $region17: #{tpu_custom_call.1} parent=15 // pred_check
          %p143 = pneg %p60
        $region18: #{tpu_custom_call.1} parent=15 // pred_check_branch
          %145 = sbr.rel (%p143) target = $region20
        $region19: #{tpu_custom_call.1} parent=15 // pred_region
          %s146 = sand.u32 %s50, 1
          %s147 = scalar_lea.sflag [#allocation3], %s146
          %s148 = sand.u32 %s50, 1
          %s149 = smul.addr %s148, 8
          %s150 = scalar_lea.vmem [#allocation2], %s149
          %s151 = smul.u32 2, %s25
          %153 = vsyncadd %s147, 0
          %s154 = smul.addr %s26, 2
          %s155 = sadd.s32 %s151, %s154
          %s156 = smul.addr %s24, 2
          %s157 = sadd.s32 %s155, %s156
          %s158 = smul.addr %s157, 4
          %s159 = scalar_lea.hbm %s0, %s158
          %s161 = sshll.u32 %s159, 4
          %s162 = int_to_ptr.hbm [resolvable:$true] %s161
          %s163 = sshll.u32 %s150, 4
          %s164 = int_to_ptr.vmem [resolvable:$true] %s163
          %166 = dma.hbm_to_vmem [thread:$0]  %s162, 128, %s164, %s147
        $region20: #{tpu_custom_call.1} parent=15 // pred_fallthru
          _
        // Predicated region
        $region21: #{tpu_custom_call.1} parent=15 // pred_check
          %p167 = pneg %p88
        $region22: #{tpu_custom_call.1} parent=15 // pred_check_branch
          %169 = sbr.rel (%p167) target = $region24
        $region23: #{tpu_custom_call.1} parent=15 // pred_region
          %s170 = sand.u32 %s78, 1
          %s171 = scalar_lea.sflag [#allocation6], %s170
          %s172 = sand.u32 %s78, 1
          %s173 = smul.addr %s172, 2
          %s174 = scalar_lea.vmem [#allocation5], %s173
          %s175 = smul.u32 2, %s25
          %177 = vsyncadd %s171, 0
          %s178 = smul.addr %s24, 2
          %s179 = sadd.s32 %s175, %s178
          %s180 = scalar_lea.hbm %s1, %s179
          %s182 = sshll.u32 %s180, 4
          %s183 = int_to_ptr.hbm [resolvable:$true] %s182
          %s184 = sshll.u32 %s174, 4
          %s185 = int_to_ptr.vmem [resolvable:$true] %s184
          %187 = dma.hbm_to_vmem [thread:$0]  %s183, 32, %s185, %s171
        $region24: #{tpu_custom_call.1} parent=15 // pred_fallthru
          _
      $region16: #{tpu_custom_call.1} parent=5 // pred_fallthru
        _
      %p188 = scmp.le.s32.totalorder 1, %s17
      %p189 = scmp.lt.s32.totalorder %s17, 3
      %p190 = pnand %p188, %p189
      %p191 = pneg %p190
      // Predicated region
      $region25: #{tpu_custom_call.1} parent=5 // pred_check
        _
      $region26: #{tpu_custom_call.1} parent=5 // pred_check_branch
        %193 = sbr.rel (%p190) target = $region28
      $region27: #{tpu_custom_call.1} parent=5 // pred_region
        %s194 = ssub.s32 %s17, 1
        %s195 = sand.u32 %s53, 1
        %s196 = scalar_lea.sflag [#allocation3], %s195
        %s197 = sand.u32 %s53, 1
        %s198 = smul.addr %s197, 8
        %s199 = scalar_lea.vmem [#allocation2], %s198
        // Predicated region
        $region29: #{tpu_custom_call.1} parent=27 // pred_check
          %p200 = pneg %p66
        $region30: #{tpu_custom_call.1} parent=27 // pred_check_branch
          %202 = sbr.rel (%p200) target = $region32
        $region31: #{tpu_custom_call.1} parent=27 // pred_region
          %204 = dma.done %s196, 128
        $region32: #{tpu_custom_call.1} parent=27 // pred_fallthru
          _
        %s205 = sand.u32 %s81, 1
        %s206 = scalar_lea.sflag [#allocation6], %s205
        %s207 = sand.u32 %s81, 1
        %s208 = smul.addr %s207, 2
        %s209 = scalar_lea.vmem [#allocation5], %s208
        // Predicated region
        $region33: #{tpu_custom_call.1} parent=27 // pred_check
          %p210 = pneg %p94
        $region34: #{tpu_custom_call.1} parent=27 // pred_check_branch
          %212 = sbr.rel (%p210) target = $region36
        $region35: #{tpu_custom_call.1} parent=27 // pred_region
          %214 = dma.done %s206, 32
        $region36: #{tpu_custom_call.1} parent=27 // pred_fallthru
          _
        %s215 = sand.u32 %s53, 1
        %s216 = scalar_lea.sflag [#allocation3], %s215
        %s217 = sand.u32 %s53, 1
        %s218 = smul.addr %s217, 8
        %s219 = scalar_lea.vmem [#allocation2], %s218
        %p220 = pneg %p66
        %p221 = pneg %p63
        %s222 = sand.u32 %s81, 1
        %s223 = scalar_lea.sflag [#allocation6], %s222
        %s224 = sand.u32 %s81, 1
        %s225 = smul.addr %s224, 2
        %s226 = scalar_lea.vmem [#allocation5], %s225
        %p227 = pneg %p94
        %p228 = pneg %p91
        %p229 = pneg %p124
        %p230 = pneg %p121
        %s231 = sand.u32 %s111, 1
        %s232 = scalar_lea.sflag [#allocation4], %s231
        %s233 = sand.u32 %s111, 1
        %s234 = smul.addr %s233, 8
        %s235 = scalar_lea.vmem [#allocation7], %s234
        %s236 = smul.u32 2, %s28
        %s237 = smul.u32 2, %s28
        %s238 = smul.u32 2, %s28
        %v239 = vld [vmem:[%s199] sm:$0xff]
        %v240 = vld [vmem:[%s209] sm:$0x3]
        %v242 = vperm.slane %v240, 0
        %v243 = vperm.slane %v240, 1
        %v244 = vrot.slane %v243, 4
        %vm245 = vcmask 1043456
        %v246 = vsel %vm245, %v242, %v244
        %v248 = vmul.f32 %v239, %v246
        %v249 = vmax.f32 %v248, 0.0
        %250 = vst [vmem:[%s235] sm:$0xff] %v249
        %s251 = sand.u32 %s111, 1
        %s252 = scalar_lea.sflag [#allocation4], %s251
        %s253 = sand.u32 %s111, 1
        %s254 = smul.addr %s253, 8
        %s255 = scalar_lea.vmem [#allocation7], %s254
        // Predicated region
        $region37: #{tpu_custom_call.1} parent=27 // pred_check
          %p256 = pneg %p121
        $region38: #{tpu_custom_call.1} parent=27 // pred_check_branch
          %258 = sbr.rel (%p256) target = $region40
        $region39: #{tpu_custom_call.1} parent=27 // pred_region
          %s259 = smul.u32 2, %s28
          %261 = vsyncadd %s252, 0
          %s262 = smul.addr %s29, 2
          %s263 = sadd.s32 %s259, %s262
          %s264 = smul.addr %s27, 2
          %s265 = sadd.s32 %s263, %s264
          %s266 = smul.addr %s265, 4
          %s267 = scalar_lea.hbm %s2, %s266
          %s269 = sshll.u32 %s255, 4
          %s270 = int_to_ptr.vmem [resolvable:$true] %s269
          %s271 = sshll.u32 %s267, 4
          %s272 = int_to_ptr.hbm [resolvable:$true] %s271
          %274 = dma.vmem_to_hbm [thread:$0]  %s270, 128, %s272, %s252
        $region40: #{tpu_custom_call.1} parent=27 // pred_fallthru
          _
      $region28: #{tpu_custom_call.1} parent=5 // pred_fallthru
        _
      %p275 = scmp.le.s32.totalorder 2, %s17
      // Predicated region
      $region41: #{tpu_custom_call.1} parent=5 // pred_check
        %p276 = pneg %p275
      $region42: #{tpu_custom_call.1} parent=5 // pred_check_branch
        %278 = sbr.rel (%p276) target = $region44
      $region43: #{tpu_custom_call.1} parent=5 // pred_region
        %s279 = ssub.s32 %s17, 2
        // Predicated region
        $region45: #{tpu_custom_call.1} parent=43 // pred_check
          %p280 = pneg %p127
        $region46: #{tpu_custom_call.1} parent=43 // pred_check_branch
          %282 = sbr.rel (%p280) target = $region48
        $region47: #{tpu_custom_call.1} parent=43 // pred_region
          %s283 = sand.u32 %s112, 1
          %s284 = scalar_lea.sflag [#allocation4], %s283
          %s285 = sand.u32 %s112, 1
          %s286 = smul.addr %s285, 8
          %s287 = scalar_lea.vmem [#allocation7], %s286
          %289 = dma.done %s284, 128
        $region48: #{tpu_custom_call.1} parent=43 // pred_fallthru
          _
      $region44: #{tpu_custom_call.1} parent=5 // pred_fallthru
        _
    $region6: #{tpu_custom_call.1} parent=1 // loop_footer
      %s21 = sadd.s32 1, %s17
    $region7: #{tpu_custom_call.1} parent=1 // loop_footer_branch
      %16 = sbr.rel target = $region3
    $region8: #{tpu_custom_call.1} parent=1 // loop_exit
      _
    %290 = vsyncpa [#allocation3], 1
    %s291 = scalar_lea.sflag [#allocation3], 1
    %292 = vsyncpa %s291, 1
    %293 = vsyncpa [#allocation6], 1
    %s294 = scalar_lea.sflag [#allocation6], 1
    %295 = vsyncpa %s294, 1
    %296 = vsyncpa [#allocation4], 1
    %s297 = scalar_lea.sflag [#allocation4], 1
    %298 = vsyncpa %s297, 1

</llo_original>
